<compile_context>
chip_gen: v7x
topology: tpu7x:2x2x1
jax: 0.10.0
libtpu: 0.0.40
codegen_flags: <defaults>
</compile_context>

<pallas_src>
import math

import jax
import jax.numpy as jnp
from jax.experimental import pallas as pl
from jax.experimental.pallas import tpu as pltpu


def _round_up(x, m):
    return (x + m - 1) // m * m


def _vmem_capacity_bytes():
    """Physical VMEM per TensorCore; conservative fallback = 64 MiB (v7x)."""
    try:
        return int(pltpu.get_tpu_info().vmem_capacity_bytes)
    except Exception:
        return 64 << 20


def _fold_kernel(w_ref, adj_ref, wadj_ref):
    # W' = weight @ adj, folded once in f32; cast to the matmul compute dtype
    # exactly once (avoids double rounding of a bf16 intermediate).
    wadj_ref[...] = jnp.dot(
        w_ref[...], adj_ref[...], preferred_element_type=jnp.float32
    ).astype(wadj_ref.dtype)


def _gcn_kernel(inp_ref, wadj_ref, b_ref, out_ref):
    # out_tile = inp_tile @ W' + bias   (MXU, f32 accumulation, f32 bias add)
    acc = jnp.dot(inp_ref[...], wadj_ref[...], preferred_element_type=jnp.float32)
    out_ref[...] = (acc + b_ref[...]).astype(out_ref.dtype)


def graph_convolution(inp, weight, adj, bias, *, tm=None, matmul_dtype=None):
    """(inp @ weight) @ adj + bias  ==  inp @ (weight @ adj) + bias."""
    n, f_in = inp.shape
    f_in_w, f_out = weight.shape
    assert f_in == f_in_w, "weight must be [F_in, F_out]"
    assert adj.shape == (f_out, f_out), "adj must be [F_out, F_out] (right-multiplied)"
    assert bias.shape == (f_out,)

    out_dtype = inp.dtype
    compute_dtype = jnp.dtype(matmul_dtype if matmul_dtype is not None else inp.dtype)
    c_item = compute_dtype.itemsize
    o_item = jnp.dtype(out_dtype).itemsize

    # --- lane-dense output: pad F_out to a multiple of 128 (no-op if aligned) ---
    f_out_p = _round_up(f_out, 128)
    adj_f32 = adj.astype(jnp.float32)
    bias_f32 = bias.astype(jnp.float32)
    if f_out_p != f_out:
        adj_f32 = jnp.pad(adj_f32, ((0, 0), (0, f_out_p - f_out)))
        bias_f32 = jnp.pad(bias_f32, (0, f_out_p - f_out))
    bias2d = bias_f32.reshape(1, f_out_p)

    # --- one-time fold W' = weight @ adj (f32), cast once to compute dtype ---
    wadj = pl.pallas_call(
        _fold_kernel,
        out_shape=jax.ShapeDtypeStruct((f_in, f_out_p), compute_dtype),
    )(weight.astype(jnp.float32), adj_f32)

    # --- row tile selection -------------------------------------------------
    sub = max(8, 32 // c_item)          # sublane packing: 8 f32 / 16 bf16 / 32 int8
    if tm is None:
        tm = 1024                       # HBM-bound: biggest tile that fits
    tm = max(sub, _round_up(min(int(tm), 1 << 16), sub))
    two_tiles = _round_up(pl.cdiv(n, 2), sub)   # >=2 tiles for v7x megacore
    tm = min(tm, max(two_tiles, sub), _round_up(n, sub))

    def tile_vmem_bytes(t):
        return (
            2 * t * f_in * c_item              # streamed inp blocks (2 buffers)
            + 2 * t * f_out_p * o_item         # streamed out blocks (2 buffers)
            + t * f_out_p * 4                  # f32 accumulator / bias-add temp
            + 2 * f_in * f_out_p * c_item      # resident W' (pipeline buffers)
            + 2 * f_out_p * 4                  # resident bias
        )

    budget = int(0.8 * _vmem_capacity_bytes())
    while tm > sub and tile_vmem_bytes(tm) > budget:
        tm = max(sub, _round_up(tm // 2, sub))

    vmem_limit = int(min(max(2 * tile_vmem_bytes(tm), 16 << 20), budget))
    grid = (pl.cdiv(n, tm),)            # ragged last tile; no host-side pad copy

    cost = pl.CostEstimate(
        flops=2 * n * f_in * f_out_p,
        transcendentals=0,
        bytes_accessed=(
            n * f_in * c_item
            + f_in * f_out_p * c_item
            + f_out_p * 4
            + n * f_out_p * o_item
        ),
    )

    out = pl.pallas_call(
        _gcn_kernel,
        out_shape=jax.ShapeDtypeStruct((n, f_out_p), out_dtype),
        grid_spec=pltpu.PrefetchScalarGridSpec(
            num_scalar_prefetch=0,
            grid=grid,
            in_specs=[
                pl.BlockSpec((tm, f_in), lambda i: (i, 0)),       # streamed rows
                pl.BlockSpec((f_in, f_out_p), lambda i: (0, 0)),  # resident W'
                pl.BlockSpec((1, f_out_p), lambda i: (0, 0)),     # resident bias
            ],
            out_specs=pl.BlockSpec((tm, f_out_p), lambda i: (i, 0)),
        ),
        compiler_params=pltpu.CompilerParams(
            dimension_semantics=("parallel",),   # independent row tiles (megacore)
            vmem_limit_bytes=vmem_limit,
        ),
        cost_estimate=cost,
    )(inp.astype(compute_dtype), wadj, bias2d)

    return out[:, :f_out] if f_out_p != f_out else out


if __name__ == "__main__":
    # Small shapes consistent with the module forward: adj is square on the
    # feature dim (right-multiplied) so the [F_out] bias broadcasts, as in torch.
    N, F_IN, F_OUT = 200, 32, 128

    key = jax.random.PRNGKey(0)
    k_inp, k_adj, k_w, k_b = jax.random.split(key, 4)

    # reset_parameters(): uniform(-stdv, stdv), stdv = 1/sqrt(out_features).
    stdv = 1.0 / math.sqrt(F_OUT)
    weight = jax.random.uniform(k_w, (F_IN, F_OUT), jnp.float32, -stdv, stdv)
    bias = jax.random.uniform(k_b, (F_OUT,), jnp.float32, -stdv, stdv)

    inp = jax.random.normal(k_inp, (N, F_IN), jnp.float32)
    adj = jax.random.normal(k_adj, (F_OUT, F_OUT), jnp.float32)

    ref = (inp @ weight) @ adj + bias

    def rel_err(a, b):
        return float(jnp.linalg.norm(a - b) / (jnp.linalg.norm(b) + 1e-30))

    # f32 path, default tile heuristic (2 row tiles, ragged last tile).
    out_f32 = jax.block_until_ready(graph_convolution(inp, weight, adj, bias))
    assert out_f32.shape == (N, F_OUT)
    assert out_f32.dtype == jnp.float32
    assert rel_err(out_f32, ref) < 1e-2, "f32 mismatch vs reference"

    # Explicit small tile: exercises 4 grid steps + ragged last block (200 % 64 = 8).
    out_small = jax.block_until_ready(graph_convolution(inp, weight, adj, bias, tm=64))
    assert rel_err(out_small, ref) < 1e-2, "f32 (tm=64) mismatch vs reference"

    # bf16 matmul-operand path (throughput lever on v5e/v6e/v7x); W' fold is
    # done in f32 and cast once, accumulation stays f32.
    out_bf16 = jax.block_until_ready(
        graph_convolution(inp, weight, adj, bias, matmul_dtype=jnp.bfloat16)
    )
    assert out_bf16.shape == (N, F_OUT)
    assert rel_err(out_bf16, ref) < 3e-2, "bf16 mismatch vs reference"

    print("KERNEL_OK")
</pallas_src>

<mosaic_0001>
module attributes {stable_mosaic.version = 11 : i64} {
  func.func @_fold_kernel(%arg0: memref<32x128xf32, #tpu.memory_space<vmem>>, %arg1: memref<128x128xf32, #tpu.memory_space<vmem>>, %arg2: memref<32x128xf32, #tpu.memory_space<vmem>>) attributes {dimension_semantics = [], scalar_prefetch = 0 : i64, scratch_operands = 0 : i64, tpu.core_type = #tpu.core_type<tc>} {
    %c0 = arith.constant 0 : index
    %c0_0 = arith.constant 0 : index
    %0 = vector.load %arg0[%c0, %c0_0] : memref<32x128xf32, #tpu.memory_space<vmem>>, vector<32x128xf32>
    %c0_1 = arith.constant 0 : index
    %c0_2 = arith.constant 0 : index
    %1 = vector.load %arg1[%c0_1, %c0_2] : memref<128x128xf32, #tpu.memory_space<vmem>>, vector<128x128xf32>
    %cst = arith.constant dense<0.000000e+00> : vector<32x128xf32>
    %2 = tpu.matmul %0, %1, %cst {dimension_numbers = #tpu.dot_dimension_numbers<[1], [0], [0], [1], [0, 0, 1, 1], [], []>} : vector<32x128xf32>, vector<128x128xf32>, vector<32x128xf32> -> vector<32x128xf32>
    %c0_3 = arith.constant 0 : index
    %c0_4 = arith.constant 0 : index
    %3 = vector.load %arg2[%c0_3, %c0_4] : memref<32x128xf32, #tpu.memory_space<vmem>>, vector<32x128xf32>
    tpu.vector_store %arg2[%c0_3, %c0_4], %2 {strides = array<i32>} : memref<32x128xf32, #tpu.memory_space<vmem>>, vector<32x128xf32>,
    return
  }
}

</mosaic_0001>

<llo_original>
// kernel: tpu_custom_call.1
$region0: #{tpu_custom_call.1}
  #allocation0 [shape = 'u32[]', space=smem, size = 0x4, offset = 0x4, fixed_abs, tag = 'smem constant byte address 0x4 - core index']
  #allocation1 [shape = 'u32[144,128]{1,0:T(1,128)}', space=vmem, size = 0x12000, scoped, tag = 'internal scratch']
  %s0 = inlined_call_operand.hbm [shape: f32[32,128], index: 0, kind: input, shape index: {}]
  %s1 = inlined_call_operand.hbm [shape: f32[128,128], index: 1, kind: input, shape index: {}]
  %s2 = inlined_call_operand.hbm [shape: f32[32,128], index: 2, kind: output, shape index: {}]
  %s3 = sld [smem:[#allocation0]]
  $region26: #{tpu_custom_call.1} parent=0
    _
  %s5 = ssub.s32 1, %s3
  %s6 = scalar_select 0, %s5, %s3
  $region1: #{tpu_custom_call.1} parent=0
    #allocation2 [shape = 'u8[16384]{0}', space=vmem, size = 0x4000, scoped, tag = 'input window, operand 0, single buffered']
    #allocation3 [shape = 's32[1]{0}', space=sflag, size = 0x4, scoped, tag = 'scoped memory for tpu_custom_call.1']
    #allocation4 [shape = 's32[1]{0}', space=sflag, size = 0x4, scoped, tag = 'scoped memory for tpu_custom_call.1']
    #allocation5 [shape = 'u8[65536]{0}', space=vmem, size = 0x10000, scoped, tag = 'input window, operand 1, single buffered']
    #allocation6 [shape = 's32[1]{0}', space=sflag, size = 0x4, scoped, tag = 'scoped memory for tpu_custom_call.1']
    #allocation7 [shape = 'u8[16384]{0}', space=vmem, size = 0x4000, scoped, tag = 'output window, operand 0, single buffered']
    %7 = vsyncpa [#allocation3], 0
    %8 = vsyncpa [#allocation6], 0
    %9 = vsyncpa [#allocation4], 0
    // Predicated region
    $region2: #{tpu_custom_call.1} parent=1 // pred_check
      _
    $region3: #{tpu_custom_call.1} parent=1 // pred_check_branch
      %11 = sbr.rel (0) target = $region5
    $region4: #{tpu_custom_call.1} parent=1 // pred_region
      %s13 = ssub.s32 512, 512
      %14 = vsyncadd [#allocation3], %s13
      %s15 = sshll.u32 [#allocation2], 4
      %s16 = int_to_ptr.vmem [resolvable:$true] %s15
      %21 = dma.hbm_to_vmem [thread:$0]  %s0, 512, %s16, [#allocation3], 128, 128, 8
    $region5: #{tpu_custom_call.1} parent=1 // pred_fallthru
      _
    // Predicated region
    $region6: #{tpu_custom_call.1} parent=1 // pred_check
      _
    $region7: #{tpu_custom_call.1} parent=1 // pred_check_branch
      %23 = sbr.rel (0) target = $region9
    $region8: #{tpu_custom_call.1} parent=1 // pred_region
      %s25 = ssub.s32 2048, 2048
      %26 = vsyncadd [#allocation6], %s25
      %s27 = sshll.u32 [#allocation5], 4
      %s28 = int_to_ptr.vmem [resolvable:$true] %s27
      %33 = dma.hbm_to_vmem [thread:$0]  %s1, 2048, %s28, [#allocation6], 128, 128, 8
    $region9: #{tpu_custom_call.1} parent=1 // pred_fallthru
      _
    // Predicated region
    $region10: #{tpu_custom_call.1} parent=1 // pred_check
      _
    $region11: #{tpu_custom_call.1} parent=1 // pred_check_branch
      %35 = sbr.rel (0) target = $region13
    $region12: #{tpu_custom_call.1} parent=1 // pred_region
      %36 = dma.done [#allocation3], 512
    $region13: #{tpu_custom_call.1} parent=1 // pred_fallthru
      _
    // Predicated region
    $region14: #{tpu_custom_call.1} parent=1 // pred_check
      _
    $region15: #{tpu_custom_call.1} parent=1 // pred_check_branch
      %38 = sbr.rel (0) target = $region17
    $region16: #{tpu_custom_call.1} parent=1 // pred_region
      %39 = dma.done [#allocation6], 2048
    $region17: #{tpu_custom_call.1} parent=1 // pred_fallthru
      _
    %v40 = vld [vmem:[#allocation2] sm:$0xff]
    %v41 = vld [vmem:[#allocation2 + $0x8] sm:$0xff]
    %v42 = vld [vmem:[#allocation2 + $0x10] sm:$0xff]
    %v43 = vld [vmem:[#allocation2 + $0x18] sm:$0xff]
    %v44 = vld [vmem:[#allocation5] sm:$0xff]
    %v45 = vld [vmem:[#allocation5 + $0x8] sm:$0xff]
    %v46 = vld [vmem:[#allocation5 + $0x10] sm:$0xff]
    %v47 = vld [vmem:[#allocation5 + $0x18] sm:$0xff]
    %v48 = vld [vmem:[#allocation5 + $0x20] sm:$0xff]
    %v49 = vld [vmem:[#allocation5 + $0x28] sm:$0xff]
    %v50 = vld [vmem:[#allocation5 + $0x30] sm:$0xff]
    %v51 = vld [vmem:[#allocation5 + $0x38] sm:$0xff]
    %v52 = vld [vmem:[#allocation5 + $0x40] sm:$0xff]
    %v53 = vld [vmem:[#allocation5 + $0x48] sm:$0xff]
    %v54 = vld [vmem:[#allocation5 + $0x50] sm:$0xff]
    %v55 = vld [vmem:[#allocation5 + $0x58] sm:$0xff]
    %v56 = vld [vmem:[#allocation5 + $0x60] sm:$0xff]
    %v57 = vld [vmem:[#allocation5 + $0x68] sm:$0xff]
    %v58 = vld [vmem:[#allocation5 + $0x70] sm:$0xff]
    %v59 = vld [vmem:[#allocation5 + $0x78] sm:$0xff]
    %60 = vmatprep.subr.mxu0 0.0
    %61 = vmatpush1.msra.mxu0 %v44
    %62 = vmatprep.subr.mxu0 0.0
    %63 = vmatpush1.msra.mxu0 %v45
    %64 = vmatprep.subr.mxu0 0.0
    %65 = vmatpush1.msra.mxu0 %v46
    %66 = vmatprep.subr.mxu0 0.0
    %67 = vmatpush1.msra.mxu0 %v47
    %68 = vmatprep.subr.mxu0 0.0
    %69 = vmatpush1.msra.mxu0 %v48
    %70 = vmatprep.subr.mxu0 0.0
    %71 = vmatpush1.msra.mxu0 %v49
    %72 = vmatprep.subr.mxu0 0.0
    %73 = vmatpush1.msra.mxu0 %v50
    %74 = vmatprep.subr.mxu0 0.0
    %75 = vmatpush1.msra.mxu0 %v51
    %76 = vmatprep.subr.mxu0 0.0
    %77 = vmatpush1.msra.mxu0 %v52
    %78 = vmatprep.subr.mxu0 0.0
    %79 = vmatpush1.msra.mxu0 %v53
    %80 = vmatprep.subr.mxu0 0.0
    %81 = vmatpush1.msra.mxu0 %v54
    %82 = vmatprep.subr.mxu0 0.0
    %83 = vmatpush1.msra.mxu0 %v55
    %84 = vmatprep.subr.mxu0 0.0
    %85 = vmatpush1.msra.mxu0 %v56
    %86 = vmatprep.subr.mxu0 0.0
    %87 = vmatpush1.msra.mxu0 %v57
    %88 = vmatprep.subr.mxu0 0.0
    %89 = vmatpush1.msra.mxu0 %v58
    %90 = vmatprep.subr.mxu0 0.0
    %91 = vmatpush1.msra.mxu0 %v59
    %92 = vmatprep.subr.mxu0 0.0
    %93 = vmatpush1.msra.mxu0 0.0
    %94 = vmatprep.subr.mxu0 0.0
    %95 = vmatpush1.msra.mxu0 0.0
    %96 = vmatprep.subr.mxu0 0.0
    %97 = vmatpush1.msra.mxu0 0.0
    %98 = vmatprep.subr.mxu0 0.0
    %99 = vmatpush1.msra.mxu0 0.0
    %100 = vmatprep.subr.mxu0 0.0
    %101 = vmatpush1.msra.mxu0 0.0
    %102 = vmatprep.subr.mxu0 0.0
    %103 = vmatpush1.msra.mxu0 0.0
    %104 = vmatprep.subr.mxu0 0.0
    %105 = vmatpush1.msra.mxu0 0.0
    %106 = vmatprep.subr.mxu0 0.0
    %107 = vmatpush1.msra.mxu0 0.0
    %108 = vmatprep.subr.mxu0 0.0
    %109 = vmatpush1.msra.mxu0 0.0
    %110 = vmatprep.subr.mxu0 0.0
    %111 = vmatpush1.msra.mxu0 0.0
    %112 = vmatprep.subr.mxu0 0.0
    %113 = vmatpush1.msra.mxu0 0.0
    %114 = vmatprep.subr.mxu0 0.0
    %115 = vmatpush1.msra.mxu0 0.0
    %116 = vmatprep.subr.mxu0 0.0
    %117 = vmatpush1.msra.mxu0 0.0
    %118 = vmatprep.subr.mxu0 0.0
    %119 = vmatpush1.msra.mxu0 0.0
    %120 = vmatprep.subr.mxu0 0.0
    %121 = vmatpush1.msra.mxu0 0.0
    %122 = vmatprep.subr.mxu0 0.0
    %123 = vmatpush1.msra.mxu0 0.0
    %124 = vmatprep.mubr.f32.mxu0 0.0
    %125 = vmatmul.mubr.f32.gmra.mrb[0].mxu0 %v40
    %v126 = vpop.f32.mrb[0].mxu0
    %v127 = vadd.f32 0.0, %v126
    %v128 = vpop.f32.mrb[0].mxu0
    %129 = vmatprep.mubr.f32.mxu0 0.0
    %130 = vmatmul.mubr.f32.gmra.mrb[0].mxu0 %v41
    %v131 = vpop.f32.mrb[0].mxu0
    %v132 = vadd.f32 0.0, %v131
    %v133 = vpop.f32.mrb[0].mxu0
    %134 = vmatprep.mubr.f32.mxu0 0.0
    %135 = vmatmul.mubr.f32.gmra.mrb[0].mxu0 %v42
    %v136 = vpop.f32.mrb[0].mxu0
    %v137 = vadd.f32 0.0, %v136
    %v138 = vpop.f32.mrb[0].mxu0
    %139 = vmatprep.mubr.f32.mxu0 0.0
    %140 = vmatmul.mubr.f32.gmra.mrb[0].mxu0 %v43
    %v141 = vpop.f32.mrb[0].mxu0
    %v142 = vadd.f32 0.0, %v141
    %v143 = vpop.f32.mrb[0].mxu0
    %144 = vdwg.mxu0
    %145 = vst [vmem:[#allocation7] sm:$0xff] %v127
    %146 = vst [vmem:[#allocation7 + $0x8] sm:$0xff] %v132
    %147 = vst [vmem:[#allocation7 + $0x10] sm:$0xff] %v137
    %148 = vst [vmem:[#allocation7 + $0x18] sm:$0xff] %v142
    // Predicated region
    $region18: #{tpu_custom_call.1} parent=1 // pred_check
      _
    $region19: #{tpu_custom_call.1} parent=1 // pred_check_branch
      %150 = sbr.rel (0) target = $region21
    $region20: #{tpu_custom_call.1} parent=1 // pred_region
      %s152 = ssub.s32 512, 512
      %153 = vsyncadd [#allocation4], %s152
      %s154 = sshll.u32 [#allocation7], 4
      %s155 = int_to_ptr.vmem [resolvable:$true] %s154
      %160 = dma.vmem_to_hbm [thread:$0]  %s155, 512, %s2, [#allocation4], 128, 128, 8
    $region21: #{tpu_custom_call.1} parent=1 // pred_fallthru
      _
    // Predicated region
    $region22: #{tpu_custom_call.1} parent=1 // pred_check
      _
    $region23: #{tpu_custom_call.1} parent=1 // pred_check_branch
      %162 = sbr.rel (0) target = $region25
    $region24: #{tpu_custom_call.1} parent=1 // pred_region
      %163 = dma.done [#allocation4], 512
    $region25: #{tpu_custom_call.1} parent=1 // pred_fallthru
      _
    %164 = vsyncpa [#allocation3], 1
    %165 = vsyncpa [#allocation6], 1
    %166 = vsyncpa [#allocation4], 1

</llo_original>
